<compile_context>
chip_gen: v7x
topology: tpu7x:2x2x1
jax: 0.10.0
libtpu: 0.0.40
codegen_flags: <defaults>
</compile_context>

<pallas_src>
import math
import functools

import jax
import jax.numpy as jnp
from jax.experimental import pallas as pl
from jax.experimental.pallas import tpu as pltpu


# -----------------------------------------------------------------------------
# Small helpers
# -----------------------------------------------------------------------------
def _round_up(x, m):
    return ((x + m - 1) // m) * m


def _sigmoid(x):
    # sigmoid(x) == 0.5 * tanh(0.5 * x) + 0.5  -> one EUP tanh pass per gate.
    return 0.5 * jnp.tanh(0.5 * x) + 0.5


def _physical_vmem_bytes():
    """Best-effort physical VMEM query; conservative 64 MiB (v7x) fallback."""
    try:
        info = pltpu.get_tpu_info()
        for name in ("vmem_capacity_bytes", "vmem_size_bytes", "vmem_bytes"):
            v = getattr(info, name, None)
            if isinstance(v, int) and v > 0:
                return v
    except Exception:
        pass
    return 64 * 1024 * 1024


def _num_tensorcores():
    """Best-effort TensorCores-per-device query (megacore / v7x awareness)."""
    try:
        dev = jax.devices()[0]
        for name in ("num_cores", "core_count", "num_cores_per_chip"):
            v = getattr(dev, name, None)
            if isinstance(v, int) and 0 < v <= 8:
                return v
        kind = str(getattr(dev, "device_kind", "")).lower()
        if ("v4" in kind) or ("v5p" in kind) or ("v7" in kind):
            return 2
    except Exception:
        pass
    return 1


def _limit_from(needed_bytes, physical_bytes):
    """vmem_limit_bytes: accounted working set + ~25% headroom, capped below physical."""
    cap = int(physical_bytes * 0.9)
    return int(min(cap, max(32 * 1024 * 1024, int(needed_bytes * 1.25))))


def _recurrence_vmem_bytes(Tc, Bblk, Hp, Fout, cbytes, out_bytes):
    gx_blk = 2 * Tc * Bblk * 4 * Hp * cbytes          # double-buffered gx tile
    whh = 2 * Hp * 4 * Hp * cbytes                    # resident recurrent weight (x2 buffers)
    wepi = 2 * Hp * Fout * cbytes + 2 * Fout * 4      # fused-epilogue weight + bias
    out_blk = 2 * Tc * Bblk * Fout * out_bytes        # double-buffered output tile
    scratch = 2 * Bblk * Hp * 4 + Tc * Bblk * Hp * 4  # h,c (f32) + hidden chunk slab (f32)
    return gx_blk + whh + wepi + out_blk + scratch


def _proj_vmem_bytes(row, col, I, gx_bytes, w_bytes):
    return 2 * (row * I * 4 + I * col * w_bytes + col * 4 + row * col * gx_bytes)


def _bblk_candidates(B_pad, min_sub):
    cands = [d for d in range(min_sub, min(B_pad, 128) + 1, min_sub) if B_pad % d == 0]
    if not cands:
        cands = [d for d in range(8, B_pad + 1, 8) if B_pad % d == 0] or [B_pad]
    return cands


def _choose_bblk(B_pad, min_sub, num_cores):
    cands = _bblk_candidates(B_pad, min_sub)
    if num_cores > 1:
        multi = [d for d in cands if B_pad // d >= num_cores]   # feed every TensorCore
        if multi:
            return max(multi)
    return max(cands)


def _choose_proj_tiles(N, I, G, gx_bytes, w_bytes, budget):
    col = G
    while col > 2048 and col % 256 == 0:                        # column-tile large 4H
        col //= 2
    fixed = 2 * (I * col * w_bytes + col * 4)
    per_row = 2 * (I * 4 + col * gx_bytes)
    max_rows = max(8, (budget - fixed) // per_row)
    max_rows = int(min(max_rows, 4096, N))
    row, d = 8, 8
    while d <= max_rows:
        if N % d == 0:
            row = d
        d += 8
    return row, col


# -----------------------------------------------------------------------------
# Kernel 1: layer-0 input projection  gx = x @ W_ih^T + (b_ih + b_hh)
# -----------------------------------------------------------------------------
def _input_proj_kernel(x_ref, w_ref, b_ref, y_ref):
    x = x_ref[...].astype(w_ref.dtype)                          # bf16 MXU operands when enabled
    y = jnp.dot(x, w_ref[...], preferred_element_type=jnp.float32) + b_ref[...]
    y_ref[...] = y.astype(y_ref.dtype)


def input_projection(x2d, w, b, out_dtype, *, row_tile, col_tile, vmem_limit):
    N, I = x2d.shape
    G = w.shape[1]
    cost = pl.CostEstimate(
        flops=int(2 * N * I * G),
        transcendentals=0,
        bytes_accessed=int(N * I * 4 + N * G * jnp.dtype(out_dtype).itemsize
                           + w.size * w.dtype.itemsize),
    )
    return pl.pallas_call(
        _input_proj_kernel,
        out_shape=jax.ShapeDtypeStruct((N, G), out_dtype),
        grid_spec=pltpu.PrefetchScalarGridSpec(
            num_scalar_prefetch=0,
            grid=(N // row_tile, G // col_tile),
            in_specs=[
                pl.BlockSpec((row_tile, I), lambda i, j: (i, 0)),      # x rows
                pl.BlockSpec((I, col_tile), lambda i, j: (0, j)),      # W column slice
                pl.BlockSpec((1, col_tile), lambda i, j: (0, j)),      # fused bias slice
            ],
            out_specs=pl.BlockSpec((row_tile, col_tile), lambda i, j: (i, j)),
        ),
        compiler_params=pltpu.CompilerParams(
            dimension_semantics=("parallel", "parallel"),
            vmem_limit_bytes=int(vmem_limit),
        ),
        cost_estimate=cost,
    )(x2d, w, b)


# -----------------------------------------------------------------------------
# Kernel 2: chunked LSTM recurrence with fused epilogue matmul.
#   Epilogue weight is either the next layer's W_ih^T (emit next layer's gx) or
#   the final Linear weight (emit the model output).
# -----------------------------------------------------------------------------
def _lstm_chunk_kernel(gx_ref, whh_ref, wo_ref, bo_ref, y_ref,
                       h_sc, c_sc, hbuf_sc, *, Tc, H, unroll):
    @pl.when(pl.program_id(1) == 0)                  # new batch block -> reset state
    def _():
        h_sc[...] = jnp.zeros_like(h_sc)
        c_sc[...] = jnp.zeros_like(c_sc)

    whh = whh_ref[...]                               # load resident weight once per chunk
    cdt = whh.dtype

    def step(i, carry):
        h, c = carry                                 # carried in vregs (f32)
        gates = (gx_ref[i].astype(jnp.float32)
                 + jnp.dot(h.astype(cdt), whh, preferred_element_type=jnp.float32))
        # PyTorch gate order: i, f, g, o ; gate slices are 128-lane aligned (H = Hp).
        i_g = _sigmoid(gates[:, 0 * H:1 * H])
        f_g = _sigmoid(gates[:, 1 * H:2 * H])
        g_g = jnp.tanh(gates[:, 2 * H:3 * H])
        o_g = _sigmoid(gates[:, 3 * H:4 * H])
        c_new = f_g * c + i_g * g_g
        h_new = o_g * jnp.tanh(c_new)
        hbuf_sc[i] = h_new                           # collect chunk hidden states
        return h_new, c_new

    h_fin, c_fin = jax.lax.fori_loop(0, Tc, step, (h_sc[...], c_sc[...]), unroll=unroll)
    h_sc[...] = h_fin                                # persist carry to next time chunk
    c_sc[...] = c_fin

    # Fused epilogue: one (Tc*B, Hp) x (Hp, F) matmul per chunk.
    Bblk = h_sc.shape[0]
    F = y_ref.shape[-1]
    h_all = hbuf_sc[...].reshape(Tc * Bblk, H).astype(wo_ref.dtype)
    y = jnp.dot(h_all, wo_ref[...], preferred_element_type=jnp.float32) + bo_ref[...]
    y_ref[...] = y.reshape(Tc, Bblk, F).astype(y_ref.dtype)


def lstm_layer(gx, whh, w_epi, b_epi, *, Tc, Bblk, out_dtype, vmem_limit, unroll):
    """gx: (T_pad, B_pad, 4*Hp) precomputed input gates (+bias).
    Returns the fused-epilogue projection of the layer's hidden sequence:
    either the next layer's gx (F = 4*Hp) or the final output (F = n_features)."""
    T_pad, B_pad, G = gx.shape
    Hp = whh.shape[0]
    F = w_epi.shape[1]
    nb, nt = B_pad // Bblk, T_pad // Tc

    cost = pl.CostEstimate(
        flops=int(2 * T_pad * B_pad * Hp * (G + F)),
        transcendentals=int(5 * T_pad * B_pad * Hp),          # 3 sigmoid + 2 tanh (as tanh)
        bytes_accessed=int(gx.size * gx.dtype.itemsize
                           + T_pad * B_pad * F * jnp.dtype(out_dtype).itemsize
                           + whh.size * whh.dtype.itemsize
                           + w_epi.size * w_epi.dtype.itemsize),
    )
    kernel = functools.partial(_lstm_chunk_kernel, Tc=Tc, H=Hp, unroll=unroll)
    return pl.pallas_call(
        kernel,
        out_shape=jax.ShapeDtypeStruct((T_pad, B_pad, F), out_dtype),
        grid_spec=pltpu.PrefetchScalarGridSpec(
            num_scalar_prefetch=0,
            grid=(nb, nt),
            in_specs=[
                pl.BlockSpec((Tc, Bblk, G), lambda b, t: (t, b, 0)),   # gx chunk
                pl.BlockSpec((Hp, G), lambda b, t: (0, 0)),            # W_hh^T resident
                pl.BlockSpec((Hp, F), lambda b, t: (0, 0)),            # epilogue weight
                pl.BlockSpec((1, F), lambda b, t: (0, 0)),             # epilogue bias
            ],
            out_specs=pl.BlockSpec((Tc, Bblk, F), lambda b, t: (t, b, 0)),
            scratch_shapes=[
                pltpu.VMEM((Bblk, Hp), jnp.float32),                   # h carry
                pltpu.VMEM((Bblk, Hp), jnp.float32),                   # c carry
                pltpu.VMEM((Tc, Bblk, Hp), jnp.float32),               # chunk hidden slab
            ],
        ),
        compiler_params=pltpu.CompilerParams(
            # Batch blocks are independent recurrences -> megacore-parallel;
            # the time-chunk axis is the sequential recurrence (must stay "arbitrary"
            # and last so the h/c scratch carry is valid).
            dimension_semantics=("parallel", "arbitrary"),
            vmem_limit_bytes=int(vmem_limit),
        ),
        cost_estimate=cost,
    )(gx, whh, w_epi, b_epi)


# -----------------------------------------------------------------------------
# Parameter preparation: per-gate lane padding (H -> Hp = round_up(H,128)) + dtype cast
# -----------------------------------------------------------------------------
def _pad_gate_cols(w, H, Hp):
    R = w.shape[0]
    w = w.reshape(R, 4, H)
    w = jnp.pad(w, ((0, 0), (0, 0), (0, Hp - H)))
    return w.reshape(R, 4 * Hp)


def _prepare_params(params, compute_dtype):
    H = params["lstm_layers"][0]["whh_t"].shape[0]
    Hp = max(128, _round_up(H, 128))
    layers = []
    for li, layer in enumerate(params["lstm_layers"]):
        wih = _pad_gate_cols(jnp.asarray(layer["wih_t"], jnp.float32), H, Hp)
        if li > 0:                                   # input of layer l>0 is the padded hidden
            wih = jnp.pad(wih, ((0, Hp - H), (0, 0)))
        whh = jnp.pad(_pad_gate_cols(jnp.asarray(layer["whh_t"], jnp.float32), H, Hp),
                      ((0, Hp - H), (0, 0)))
        b = _pad_gate_cols(jnp.asarray(layer["b"], jnp.float32), H, Hp)
        layers.append({"wih_t": wih.astype(compute_dtype),
                       "whh_t": whh.astype(compute_dtype),
                       "b": b})                      # bias stays f32 (added post-matmul)
    lin_w = jnp.pad(jnp.asarray(params["lin_w_t"], jnp.float32), ((0, Hp - H), (0, 0)))
    return {"lstm_layers": layers,
            "lin_w_t": lin_w.astype(compute_dtype),
            "lin_b": jnp.asarray(params["lin_b"], jnp.float32),
            "H": H, "Hp": Hp}


# -----------------------------------------------------------------------------
# Magic.forward equivalent
# -----------------------------------------------------------------------------
def magic_forward(x_bti, params, *, Tc=16, compute_dtype=jnp.bfloat16):
    """x_bti: (B, T, n_features), batch_first like the PyTorch module.
    compute_dtype controls gx storage + matmul operand dtype (elementwise stays f32)."""
    B, T, I = x_bti.shape
    prepared = _prepare_params(params, compute_dtype)
    layers = prepared["lstm_layers"]
    L = len(layers)
    Hp = prepared["Hp"]
    F = params["lin_b"].shape[-1]
    cbytes = jnp.dtype(compute_dtype).itemsize
    gx_dtype = compute_dtype

    physical = _physical_vmem_bytes()
    budget = int(physical * 0.45)                    # target working set per kernel
    num_tc = _num_tensorcores()

    # --- tiling: batch block (sublane / megacore aware) + time chunk, VMEM-budgeted.
    min_sub = 16 if cbytes < 4 else 8
    B_pad = _round_up(B, min_sub)
    Bblk = _choose_bblk(B_pad, min_sub, num_tc)
    Tc_eff = max(8, min(Tc, _round_up(T, 8)))
    Fout_max = 4 * Hp if L > 1 else F
    out_bytes_max = cbytes if L > 1 else 4
    while _recurrence_vmem_bytes(Tc_eff, Bblk, Hp, Fout_max, cbytes, out_bytes_max) > budget:
        if Tc_eff > 8:
            Tc_eff //= 2
        else:
            smaller = [d for d in _bblk_candidates(B_pad, min_sub) if d < Bblk]
            if not smaller:
                break
            Bblk = max(smaller)
    T_pad = _round_up(T, Tc_eff)
    unroll = True if Tc_eff <= 16 else 8

    # --- layout: time-major, padded
    x = jnp.transpose(x_bti, (1, 0, 2)).astype(jnp.float32)
    x = jnp.pad(x, ((0, T_pad - T), (0, B_pad - B), (0, 0)))

    # --- layer-0 input projection (one big pipelined matmul over all T_pad*B_pad rows)
    N = T_pad * B_pad
    G = 4 * Hp
    row_tile, col_tile = _choose_proj_tiles(N, I, G, cbytes, cbytes, budget)
    proj_needed = _proj_vmem_bytes(row_tile, col_tile, I, cbytes, cbytes)
    gx = input_projection(x.reshape(N, I), layers[0]["wih_t"], layers[0]["b"], gx_dtype,
                          row_tile=row_tile, col_tile=col_tile,
                          vmem_limit=_limit_from(proj_needed, physical))
    gx = gx.reshape(T_pad, B_pad, G)

    # --- recurrence, each layer fusing its epilogue matmul
    out = None
    for li in range(L):
        last = (li == L - 1)
        if last:
            w_epi, b_epi, out_dtype = prepared["lin_w_t"], prepared["lin_b"], jnp.float32
        else:
            w_epi, b_epi, out_dtype = layers[li + 1]["wih_t"], layers[li + 1]["b"], gx_dtype
        needed = _recurrence_vmem_bytes(Tc_eff, Bblk, Hp, w_epi.shape[1], cbytes,
                                        jnp.dtype(out_dtype).itemsize)
        out = lstm_layer(gx, layers[li]["whh_t"], w_epi, b_epi,
                         Tc=Tc_eff, Bblk=Bblk, out_dtype=out_dtype,
                         vmem_limit=_limit_from(needed, physical), unroll=unroll)
        if not last:
            gx = out

    y = out[:T, :B, :].astype(jnp.float32)           # drop time/batch padding
    return jnp.transpose(y, (1, 0, 2))               # back to (B, T, F)


# -----------------------------------------------------------------------------
# Deterministic parameter init (PyTorch-style uniform(-1/sqrt(H), 1/sqrt(H)))
# -----------------------------------------------------------------------------
def init_params(key, n_features, hidden_size, num_layers):
    k = 1.0 / math.sqrt(hidden_size)
    layers = []
    for l in range(num_layers):
        in_size = n_features if l == 0 else hidden_size
        key, k1, k2, k3, k4 = jax.random.split(key, 5)
        w_ih = jax.random.uniform(k1, (4 * hidden_size, in_size), jnp.float32, -k, k)
        w_hh = jax.random.uniform(k2, (4 * hidden_size, hidden_size), jnp.float32, -k, k)
        b_ih = jax.random.uniform(k3, (4 * hidden_size,), jnp.float32, -k, k)
        b_hh = jax.random.uniform(k4, (4 * hidden_size,), jnp.float32, -k, k)
        layers.append({
            "wih_t": w_ih.T,                              # (I, 4H)
            "whh_t": w_hh.T,                              # (H, 4H)
            "b": (b_ih + b_hh).reshape(1, 4 * hidden_size),
        })
    key, k5, k6 = jax.random.split(key, 3)
    lin_w = jax.random.uniform(k5, (n_features, hidden_size), jnp.float32, -k, k)
    lin_b = jax.random.uniform(k6, (n_features,), jnp.float32, -k, k)
    return {
        "lstm_layers": layers,
        "lin_w_t": lin_w.T,                               # (H, F)
        "lin_b": lin_b.reshape(1, n_features),
    }


# -----------------------------------------------------------------------------
# Pure-JAX reference (lax.scan LSTM) for correctness check
# -----------------------------------------------------------------------------
def magic_forward_ref(x_bti, params):
    B, T, F = x_bti.shape
    h_seq = jnp.transpose(x_bti, (1, 0, 2))
    for layer in params["lstm_layers"]:
        H = layer["whh_t"].shape[0]

        def step(carry, x_t, layer=layer, H=H):
            h, c = carry
            gates = x_t @ layer["wih_t"] + h @ layer["whh_t"] + layer["b"]
            i = jax.nn.sigmoid(gates[:, 0 * H:1 * H])
            f = jax.nn.sigmoid(gates[:, 1 * H:2 * H])
            g = jnp.tanh(gates[:, 2 * H:3 * H])
            o = jax.nn.sigmoid(gates[:, 3 * H:4 * H])
            c = f * c + i * g
            h = o * jnp.tanh(c)
            return (h, c), h

        init = (jnp.zeros((B, H), jnp.float32), jnp.zeros((B, H), jnp.float32))
        _, h_seq = jax.lax.scan(step, init, h_seq)
    y = h_seq @ params["lin_w_t"] + params["lin_b"]
    return jnp.transpose(y, (1, 0, 2))


if __name__ == "__main__":
    # ---- Config 1: module defaults at small scale (1 layer), f32 path, tight check.
    n_features, hidden_size, num_layers = 4, 32, 1
    B, T = 2, 8
    key = jax.random.PRNGKey(0)
    key, xkey = jax.random.split(key)
    x = jax.random.normal(xkey, (B, T, n_features), jnp.float32)
    params = init_params(key, n_features, hidden_size, num_layers)
    out = jax.block_until_ready(magic_forward(x, params, compute_dtype=jnp.float32))
    ref = jax.block_until_ready(magic_forward_ref(x, params))
    assert out.shape == (B, T, n_features)
    assert jnp.allclose(out, ref, atol=1e-4, rtol=1e-4), "mismatch vs reference (1 layer, f32)"

    # ---- Config 2: multi-layer + ragged B/T (padding + fused next-layer projection), f32.
    n2, h2, l2 = 4, 32, 2
    B2, T2 = 3, 11
    key = jax.random.PRNGKey(0)
    key, xkey2 = jax.random.split(key)
    x2 = jax.random.normal(xkey2, (B2, T2, n2), jnp.float32)
    params2 = init_params(key, n2, h2, l2)
    out2 = jax.block_until_ready(magic_forward(x2, params2, compute_dtype=jnp.float32))
    ref2 = jax.block_until_ready(magic_forward_ref(x2, params2))
    assert out2.shape == (B2, T2, n2)
    assert jnp.allclose(out2, ref2, atol=1e-4, rtol=1e-4), "mismatch vs reference (2 layers, f32)"

    # ---- Config 3: default bf16 fast path (gx + matmul operands), loose sanity check.
    n3, h3, l3 = 5, 48, 2
    B3, T3 = 25, 12
    key = jax.random.PRNGKey(0)
    key, xkey3 = jax.random.split(key)
    x3 = jax.random.normal(xkey3, (B3, T3, n3), jnp.float32)
    params3 = init_params(key, n3, h3, l3)
    out3 = jax.block_until_ready(magic_forward(x3, params3))          # bf16 default
    ref3 = jax.block_until_ready(magic_forward_ref(x3, params3))
    assert out3.shape == (B3, T3, n3)
    assert jnp.allclose(out3, ref3, atol=7.5e-2, rtol=7.5e-2), "mismatch vs reference (bf16)"

    print("KERNEL_OK")
</pallas_src>

<mosaic_0001>
module attributes {stable_mosaic.version = 11 : i64} {
  func.func @_input_proj_kernel(%arg0: i32, %arg1: i32, %arg2: memref<64x4xf32, #tpu.memory_space<vmem>>, %arg3: memref<4x512xf32, #tpu.memory_space<vmem>>, %arg4: memref<1x512xf32, #tpu.memory_space<vmem>>, %arg5: memref<64x512xf32, #tpu.memory_space<vmem>>) attributes {dimension_semantics = [#tpu.dimension_semantics<parallel>, #tpu.dimension_semantics<parallel>], iteration_bounds = array<i64: 1, 1>, scalar_prefetch = 0 : i64, scratch_operands = 0 : i64, tpu.core_type = #tpu.core_type<tc>, window_params = [{transform_indices = @transform_0, window_bounds = array<i64: 64, 4>}, {transform_indices = @transform_1, window_bounds = array<i64: 4, 512>}, {transform_indices = @transform_2, window_bounds = array<i64: 1, 512>}, {transform_indices = @transform_3, window_bounds = array<i64: 64, 512>}]} {
    %c0 = arith.constant 0 : index
    %c0_0 = arith.constant 0 : index
    %0 = vector.load %arg2[%c0, %c0_0] : memref<64x4xf32, #tpu.memory_space<vmem>>, vector<64x4xf32>
    %c0_1 = arith.constant 0 : index
    %c0_2 = arith.constant 0 : index
    %1 = vector.load %arg3[%c0_1, %c0_2] : memref<4x512xf32, #tpu.memory_space<vmem>>, vector<4x512xf32>
    %cst = arith.constant dense<0.000000e+00> : vector<64x512xf32>
    %2 = tpu.matmul %0, %1, %cst {dimension_numbers = #tpu.dot_dimension_numbers<[1], [0], [0], [1], [0, 0, 1, 1], [], []>} : vector<64x4xf32>, vector<4x512xf32>, vector<64x512xf32> -> vector<64x512xf32>
    %c0_3 = arith.constant 0 : index
    %c0_4 = arith.constant 0 : index
    %3 = vector.load %arg4[%c0_3, %c0_4] : memref<1x512xf32, #tpu.memory_space<vmem>>, vector<1x512xf32>
    %4 = vector.broadcast %3 : vector<1x512xf32> to vector<64x512xf32>
    %5 = arith.addf %2, %4 : vector<64x512xf32>
    %c0_5 = arith.constant 0 : index
    %c0_6 = arith.constant 0 : index
    %6 = vector.load %arg5[%c0_5, %c0_6] : memref<64x512xf32, #tpu.memory_space<vmem>>, vector<64x512xf32>
    tpu.vector_store %arg5[%c0_5, %c0_6], %5 {strides = array<i32>} : memref<64x512xf32, #tpu.memory_space<vmem>>, vector<64x512xf32>,
    return
  }
  func.func @transform_0(%arg0: i32, %arg1: i32) -> (i32, i32) {
    %c0_i32 = arith.constant 0 : i32
    %c0_i32_0 = arith.constant 0 : i32
    return %arg0, %c0_i32 : i32, i32
  }
  func.func @transform_1(%arg0: i32, %arg1: i32) -> (i32, i32) {
    %c0_i32 = arith.constant 0 : i32
    %c0_i32_0 = arith.constant 0 : i32
    return %c0_i32, %arg1 : i32, i32
  }
  func.func @transform_2(%arg0: i32, %arg1: i32) -> (i32, i32) {
    %c0_i32 = arith.constant 0 : i32
    %c0_i32_0 = arith.constant 0 : i32
    return %c0_i32, %arg1 : i32, i32
  }
  func.func @transform_3(%arg0: i32, %arg1: i32) -> (i32, i32) {
    %c0_i32 = arith.constant 0 : i32
    return %arg0, %arg1 : i32, i32
  }
}

</mosaic_0001>

<llo_original>
// kernel: tpu_custom_call.1
$region0: #{tpu_custom_call.1}
  #allocation0 [shape = 'u32[]', space=smem, size = 0x4, offset = 0x4, fixed_abs, tag = 'smem constant byte address 0x4 - core index']
  #allocation1 [shape = 'u32[144,128]{1,0:T(1,128)}', space=vmem, size = 0x12000, scoped, tag = 'internal scratch']
  %s0 = inlined_call_operand.vmem [shape: f32[64,4], index: 0, kind: input, shape index: {}]
  %s1 = inlined_call_operand.vmem [shape: f32[4,512], index: 1, kind: input, shape index: {}]
  %s2 = inlined_call_operand.vmem [shape: f32[1,512], index: 2, kind: input, shape index: {}]
  %s3 = inlined_call_operand.hbm [shape: f32[64,512], index: 3, kind: output, shape index: {}]
  %s4 = sld [smem:[#allocation0]]
  $region22: #{tpu_custom_call.1} parent=0
    _
  %s6 = ssub.s32 1, %s4
  %s7 = scalar_select 0, %s6, %s4
  $region1: #{tpu_custom_call.1} parent=0
    #allocation2 [shape = 'u8[131072]{0}', space=vmem, size = 0x20000, scoped, tag = 'output window, operand 0, single buffered']
    #allocation3 [shape = 's32[1]{0}', space=sflag, size = 0x4, scoped, tag = 'scoped memory for tpu_custom_call.1']
    %8 = vsyncpa [#allocation3], 0
    // Predicated region
    $region2: #{tpu_custom_call.1} parent=1 // pred_check
      _
    $region3: #{tpu_custom_call.1} parent=1 // pred_check_branch
      %10 = sbr.rel (0) target = $region5
    $region4: #{tpu_custom_call.1} parent=1 // pred_region
      _
    $region5: #{tpu_custom_call.1} parent=1 // pred_fallthru
      _
    // Predicated region
    $region6: #{tpu_custom_call.1} parent=1 // pred_check
      _
    $region7: #{tpu_custom_call.1} parent=1 // pred_check_branch
      %12 = sbr.rel (0) target = $region9
    $region8: #{tpu_custom_call.1} parent=1 // pred_region
      _
    $region9: #{tpu_custom_call.1} parent=1 // pred_fallthru
      _
    // Predicated region
    $region10: #{tpu_custom_call.1} parent=1 // pred_check
      _
    $region11: #{tpu_custom_call.1} parent=1 // pred_check_branch
      %14 = sbr.rel (0) target = $region13
    $region12: #{tpu_custom_call.1} parent=1 // pred_region
      _
    $region13: #{tpu_custom_call.1} parent=1 // pred_fallthru
      _
    %v15 = vld [vmem:[%s0] sm:$0xff]
    %v16 = vld [vmem:[%s0 + $0x8] sm:$0xff]
    %v17 = vld [vmem:[%s0 + $0x10] sm:$0xff]
    %v18 = vld [vmem:[%s0 + $0x18] sm:$0xff]
    %v19 = vld [vmem:[%s0 + $0x20] sm:$0xff]
    %v20 = vld [vmem:[%s0 + $0x28] sm:$0xff]
    %v21 = vld [vmem:[%s0 + $0x30] sm:$0xff]
    %v22 = vld [vmem:[%s0 + $0x38] sm:$0xff]
    %v23 = vld [vmem:[%s1] sm:$0xff]
    %v24 = vld [vmem:[%s1 + $0x8] sm:$0xff]
    %v25 = vld [vmem:[%s2] sm:$0xf]
    %v27 = vlaneseq
    %v28 = vshrl.u32 %v27, 7
    %v29 = vsub.s32 0, %v28
    %v30 = vrot.slane %v25, %v29
    %v31 = vlaneseq
    %v32 = vshrl.u32 %v31, 7
    %v33 = vsub.s32 1, %v32
    %v34 = vrot.slane %v25, %v33
    %v35 = vlaneseq
    %v36 = vshrl.u32 %v35, 7
    %v37 = vsub.s32 2, %v36
    %v38 = vrot.slane %v25, %v37
    %v39 = vlaneseq
    %v40 = vshrl.u32 %v39, 7
    %v41 = vsub.s32 3, %v40
    %v42 = vrot.slane %v25, %v41
    %v49 = vcombine.high %v23, %v23
    %v50 = vcombine.high %v24, %v24
    %vm51 = vcmask 31744
    %v53 = vsel %vm51, %v15, 0
    %v56 = vsel %vm51, %v16, 0
    %v59 = vsel %vm51, %v17, 0
    %v62 = vsel %vm51, %v18, 0
    %v65 = vsel %vm51, %v19, 0
    %v68 = vsel %vm51, %v20, 0
    %v71 = vsel %vm51, %v21, 0
    %v74 = vsel %vm51, %v22, 0
    %vm76 = vcmask 1043456
    %v77 = vsel %vm76, %v23, 0
    %v79 = vsel %vm76, %v49, 0
    %v81 = vsel %vm76, %v24, 0
    %v83 = vsel %vm76, %v50, 0
    %85 = vmatprep.subr.mxu0 %v79
    %86 = vmatpush1.msra.mxu0 %v77
    %87 = vmatprep.subr.mxu0 0.0
    %88 = vmatpush1.msra.mxu0 0.0
    %89 = vmatprep.subr.mxu0 0.0
    %90 = vmatpush1.msra.mxu0 0.0
    %91 = vmatprep.subr.mxu0 0.0
    %92 = vmatpush1.msra.mxu0 0.0
    %93 = vmatprep.subr.mxu0 0.0
    %94 = vmatpush1.msra.mxu0 0.0
    %95 = vmatprep.subr.mxu0 0.0
    %96 = vmatpush1.msra.mxu0 0.0
    %97 = vmatprep.subr.mxu0 0.0
    %98 = vmatpush1.msra.mxu0 0.0
    %99 = vmatprep.subr.mxu0 0.0
    %100 = vmatpush1.msra.mxu0 0.0
    %101 = vmatprep.subr.mxu0 0.0
    %102 = vmatpush1.msra.mxu0 0.0
    %103 = vmatprep.subr.mxu0 0.0
    %104 = vmatpush1.msra.mxu0 0.0
    %105 = vmatprep.subr.mxu0 0.0
    %106 = vmatpush1.msra.mxu0 0.0
    %107 = vmatprep.subr.mxu0 0.0
    %108 = vmatpush1.msra.mxu0 0.0
    %109 = vmatprep.subr.mxu0 0.0
    %110 = vmatpush1.msra.mxu0 0.0
    %111 = vmatprep.subr.mxu0 0.0
    %112 = vmatpush1.msra.mxu0 0.0
    %113 = vmatprep.subr.mxu0 0.0
    %114 = vmatpush1.msra.mxu0 0.0
    %115 = vmatprep.subr.mxu0 0.0
    %116 = vmatpush1.msra.mxu0 0.0
    %117 = vmatprep.subr.mxu0 0.0
    %118 = vmatpush1.msra.mxu0 0.0
    %119 = vmatprep.subr.mxu0 0.0
    %120 = vmatpush1.msra.mxu0 0.0
    %121 = vmatprep.subr.mxu0 0.0
    %122 = vmatpush1.msra.mxu0 0.0
    %123 = vmatprep.subr.mxu0 0.0
    %124 = vmatpush1.msra.mxu0 0.0
    %125 = vmatprep.subr.mxu0 0.0
    %126 = vmatpush1.msra.mxu0 0.0
    %127 = vmatprep.subr.mxu0 0.0
    %128 = vmatpush1.msra.mxu0 0.0
    %129 = vmatprep.subr.mxu0 0.0
    %130 = vmatpush1.msra.mxu0 0.0
    %131 = vmatprep.subr.mxu0 0.0
    %132 = vmatpush1.msra.mxu0 0.0
    %133 = vmatprep.subr.mxu0 0.0
    %134 = vmatpush1.msra.mxu0 0.0
    %135 = vmatprep.subr.mxu0 0.0
    %136 = vmatpush1.msra.mxu0 0.0
    %137 = vmatprep.subr.mxu0 0.0
    %138 = vmatpush1.msra.mxu0 0.0
    %139 = vmatprep.subr.mxu0 0.0
    %140 = vmatpush1.msra.mxu0 0.0
    %141 = vmatprep.subr.mxu0 0.0
    %142 = vmatpush1.msra.mxu0 0.0
    %143 = vmatprep.subr.mxu0 0.0
    %144 = vmatpush1.msra.mxu0 0.0
    %145 = vmatprep.subr.mxu0 0.0
    %146 = vmatpush1.msra.mxu0 0.0
    %147 = vmatprep.subr.mxu0 0.0
    %148 = vmatpush1.msra.mxu0 0.0
    %149 = vmatprep.mubr.f32.mxu0 0.0
    %150 = vmatmul.mubr.f32.gmra.mrb[0].mxu0 %v53
    %v151 = vpop.f32.mrb[0].mxu0
    %v152 = vadd.f32 %v30, %v151
    %v153 = vpop.f32.mrb[0].mxu0
    %v154 = vadd.f32 %v34, %v153
    %155 = vmatprep.mubr.f32.mxu0 0.0
    %156 = vmatmul.mubr.f32.gmra.mrb[0].mxu0 %v56
    %v157 = vpop.f32.mrb[0].mxu0
    %v158 = vadd.f32 %v30, %v157
    %v159 = vpop.f32.mrb[0].mxu0
    %v160 = vadd.f32 %v34, %v159
    %161 = vmatprep.mubr.f32.mxu0 0.0
    %162 = vmatmul.mubr.f32.gmra.mrb[0].mxu0 %v59
    %v163 = vpop.f32.mrb[0].mxu0
    %v164 = vadd.f32 %v30, %v163
    %v165 = vpop.f32.mrb[0].mxu0
    %v166 = vadd.f32 %v34, %v165
    %167 = vmatprep.mubr.f32.mxu0 0.0
    %168 = vmatmul.mubr.f32.gmra.mrb[0].mxu0 %v62
    %v169 = vpop.f32.mrb[0].mxu0
    %v170 = vadd.f32 %v30, %v169
    %v171 = vpop.f32.mrb[0].mxu0
    %v172 = vadd.f32 %v34, %v171
    %173 = vmatprep.mubr.f32.mxu0 0.0
    %174 = vmatmul.mubr.f32.gmra.mrb[0].mxu0 %v65
    %v175 = vpop.f32.mrb[0].mxu0
    %v176 = vadd.f32 %v30, %v175
    %v177 = vpop.f32.mrb[0].mxu0
    %v178 = vadd.f32 %v34, %v177
    %179 = vmatprep.mubr.f32.mxu0 0.0
    %180 = vmatmul.mubr.f32.gmra.mrb[0].mxu0 %v68
    %v181 = vpop.f32.mrb[0].mxu0
    %v182 = vadd.f32 %v30, %v181
    %v183 = vpop.f32.mrb[0].mxu0
    %v184 = vadd.f32 %v34, %v183
    %185 = vmatprep.mubr.f32.mxu0 0.0
    %186 = vmatmul.mubr.f32.gmra.mrb[0].mxu0 %v71
    %v187 = vpop.f32.mrb[0].mxu0
    %v188 = vadd.f32 %v30, %v187
    %v189 = vpop.f32.mrb[0].mxu0
    %v190 = vadd.f32 %v34, %v189
    %191 = vmatprep.mubr.f32.mxu0 0.0
    %192 = vmatmul.mubr.f32.gmra.mrb[0].mxu0 %v74
    %v193 = vpop.f32.mrb[0].mxu0
    %v194 = vadd.f32 %v30, %v193
    %v195 = vpop.f32.mrb[0].mxu0
    %v196 = vadd.f32 %v34, %v195
    %197 = vdwg.mxu0
    %198 = vmatprep.subr.mxu0 %v83
    %199 = vmatpush1.msra.mxu0 %v81
    %200 = vmatprep.subr.mxu0 0.0
    %201 = vmatpush1.msra.mxu0 0.0
    %202 = vmatprep.subr.mxu0 0.0
    %203 = vmatpush1.msra.mxu0 0.0
    %204 = vmatprep.subr.mxu0 0.0
    %205 = vmatpush1.msra.mxu0 0.0
    %206 = vmatprep.subr.mxu0 0.0
    %207 = vmatpush1.msra.mxu0 0.0
    %208 = vmatprep.subr.mxu0 0.0
    %209 = vmatpush1.msra.mxu0 0.0
    %210 = vmatprep.subr.mxu0 0.0
    %211 = vmatpush1.msra.mxu0 0.0
    %212 = vmatprep.subr.mxu0 0.0
    %213 = vmatpush1.msra.mxu0 0.0
    %214 = vmatprep.subr.mxu0 0.0
    %215 = vmatpush1.msra.mxu0 0.0
    %216 = vmatprep.subr.mxu0 0.0
    %217 = vmatpush1.msra.mxu0 0.0
    %218 = vmatprep.subr.mxu0 0.0
    %219 = vmatpush1.msra.mxu0 0.0
    %220 = vmatprep.subr.mxu0 0.0
    %221 = vmatpush1.msra.mxu0 0.0
    %222 = vmatprep.subr.mxu0 0.0
    %223 = vmatpush1.msra.mxu0 0.0
    %224 = vmatprep.subr.mxu0 0.0
    %225 = vmatpush1.msra.mxu0 0.0
    %226 = vmatprep.subr.mxu0 0.0
    %227 = vmatpush1.msra.mxu0 0.0
    %228 = vmatprep.subr.mxu0 0.0
    %229 = vmatpush1.msra.mxu0 0.0
    %230 = vmatprep.subr.mxu0 0.0
    %231 = vmatpush1.msra.mxu0 0.0
    %232 = vmatprep.subr.mxu0 0.0
    %233 = vmatpush1.msra.mxu0 0.0
    %234 = vmatprep.subr.mxu0 0.0
    %235 = vmatpush1.msra.mxu0 0.0
    %236 = vmatprep.subr.mxu0 0.0
    %237 = vmatpush1.msra.mxu0 0.0
    %238 = vmatprep.subr.mxu0 0.0
    %239 = vmatpush1.msra.mxu0 0.0
    %240 = vmatprep.subr.mxu0 0.0
    %241 = vmatpush1.msra.mxu0 0.0
    %242 = vmatprep.subr.mxu0 0.0
    %243 = vmatpush1.msra.mxu0 0.0
    %244 = vmatprep.subr.mxu0 0.0
    %245 = vmatpush1.msra.mxu0 0.0
    %246 = vmatprep.subr.mxu0 0.0
    %247 = vmatpush1.msra.mxu0 0.0
    %248 = vmatprep.subr.mxu0 0.0
    %249 = vmatpush1.msra.mxu0 0.0
    %250 = vmatprep.subr.mxu0 0.0
    %251 = vmatpush1.msra.mxu0 0.0
    %252 = vmatprep.subr.mxu0 0.0
    %253 = vmatpush1.msra.mxu0 0.0
    %254 = vmatprep.subr.mxu0 0.0
    %255 = vmatpush1.msra.mxu0 0.0
    %256 = vmatprep.subr.mxu0 0.0
    %257 = vmatpush1.msra.mxu0 0.0
    %258 = vmatprep.subr.mxu0 0.0
    %259 = vmatpush1.msra.mxu0 0.0
    %260 = vmatprep.subr.mxu0 0.0
    %261 = vmatpush1.msra.mxu0 0.0
    %262 = vmatprep.mubr.f32.mxu0 0.0
    %263 = vmatmul.mubr.f32.gmra.mrb[0].mxu0 %v53
    %v264 = vpop.f32.mrb[0].mxu0
    %v265 = vadd.f32 %v38, %v264
    %v266 = vpop.f32.mrb[0].mxu0
    %v267 = vadd.f32 %v42, %v266
    %268 = vmatprep.mubr.f32.mxu0 0.0
    %269 = vmatmul.mubr.f32.gmra.mrb[0].mxu0 %v56
    %v270 = vpop.f32.mrb[0].mxu0
    %v271 = vadd.f32 %v38, %v270
    %v272 = vpop.f32.mrb[0].mxu0
    %v273 = vadd.f32 %v42, %v272
    %274 = vmatprep.mubr.f32.mxu0 0.0
    %275 = vmatmul.mubr.f32.gmra.mrb[0].mxu0 %v59
    %v276 = vpop.f32.mrb[0].mxu0
    %v277 = vadd.f32 %v38, %v276
    %v278 = vpop.f32.mrb[0].mxu0
    %v279 = vadd.f32 %v42, %v278
    %280 = vmatprep.mubr.f32.mxu0 0.0
    %281 = vmatmul.mubr.f32.gmra.mrb[0].mxu0 %v62
    %v282 = vpop.f32.mrb[0].mxu0
    %v283 = vadd.f32 %v38, %v282
    %v284 = vpop.f32.mrb[0].mxu0
    %v285 = vadd.f32 %v42, %v284
    %286 = vmatprep.mubr.f32.mxu0 0.0
    %287 = vmatmul.mubr.f32.gmra.mrb[0].mxu0 %v65
    %v288 = vpop.f32.mrb[0].mxu0
    %v289 = vadd.f32 %v38, %v288
    %v290 = vpop.f32.mrb[0].mxu0
    %v291 = vadd.f32 %v42, %v290
    %292 = vmatprep.mubr.f32.mxu0 0.0
    %293 = vmatmul.mubr.f32.gmra.mrb[0].mxu0 %v68
    %v294 = vpop.f32.mrb[0].mxu0
    %v295 = vadd.f32 %v38, %v294
    %v296 = vpop.f32.mrb[0].mxu0
    %v297 = vadd.f32 %v42, %v296
    %298 = vmatprep.mubr.f32.mxu0 0.0
    %299 = vmatmul.mubr.f32.gmra.mrb[0].mxu0 %v71
    %v300 = vpop.f32.mrb[0].mxu0
    %v301 = vadd.f32 %v38, %v300
    %v302 = vpop.f32.mrb[0].mxu0
    %v303 = vadd.f32 %v42, %v302
    %304 = vmatprep.mubr.f32.mxu0 0.0
    %305 = vmatmul.mubr.f32.gmra.mrb[0].mxu0 %v74
    %v306 = vpop.f32.mrb[0].mxu0
    %v307 = vadd.f32 %v38, %v306
    %v308 = vpop.f32.mrb[0].mxu0
    %v309 = vadd.f32 %v42, %v308
    %310 = vdwg.mxu0
    %311 = vst [vmem:[#allocation2] sm:$0xff] %v152
    %312 = vst [vmem:[#allocation2 + $0x8] sm:$0xff] %v154
    %313 = vst [vmem:[#allocation2 + $0x10] sm:$0xff] %v265
    %314 = vst [vmem:[#allocation2 + $0x18] sm:$0xff] %v267
    %315 = vst [vmem:[#allocation2 + $0x20] sm:$0xff] %v158
    %316 = vst [vmem:[#allocation2 + $0x28] sm:$0xff] %v160
    %317 = vst [vmem:[#allocation2 + $0x30] sm:$0xff] %v271
    %318 = vst [vmem:[#allocation2 + $0x38] sm:$0xff] %v273
    %319 = vst [vmem:[#allocation2 + $0x40] sm:$0xff] %v164
    %320 = vst [vmem:[#allocation2 + $0x48] sm:$0xff] %v166
    %321 = vst [vmem:[#allocation2 + $0x50] sm:$0xff] %v277
    %322 = vst [vmem:[#allocation2 + $0x58] sm:$0xff] %v279
    %323 = vst [vmem:[#allocation2 + $0x60] sm:$0xff] %v170
    %324 = vst [vmem:[#allocation2 + $0x68] sm:$0xff] %v172
    %325 = vst [vmem:[#allocation2 + $0x70] sm:$0xff] %v283
    %326 = vst [vmem:[#allocation2 + $0x78] sm:$0xff] %v285
    %327 = vst [vmem:[#allocation2 + $0x80] sm:$0xff] %v176
    %328 = vst [vmem:[#allocation2 + $0x88] sm:$0xff] %v178
    %329 = vst [vmem:[#allocation2 + $0x90] sm:$0xff] %v289
    %330 = vst [vmem:[#allocation2 + $0x98] sm:$0xff] %v291
    %331 = vst [vmem:[#allocation2 + $0xa0] sm:$0xff] %v182
    %332 = vst [vmem:[#allocation2 + $0xa8] sm:$0xff] %v184
    %333 = vst [vmem:[#allocation2 + $0xb0] sm:$0xff] %v295
    %334 = vst [vmem:[#allocation2 + $0xb8] sm:$0xff] %v297
    %335 = vst [vmem:[#allocation2 + $0xc0] sm:$0xff] %v188
    %336 = vst [vmem:[#allocation2 + $0xc8] sm:$0xff] %v190
    %337 = vst [vmem:[#allocation2 + $0xd0] sm:$0xff] %v301
    %338 = vst [vmem:[#allocation2 + $0xd8] sm:$0xff] %v303
    %339 = vst [vmem:[#allocation2 + $0xe0] sm:$0xff] %v194
    %340 = vst [vmem:[#allocation2 + $0xe8] sm:$0xff] %v196
    %341 = vst [vmem:[#allocation2 + $0xf0] sm:$0xff] %v307
    %342 = vst [vmem:[#allocation2 + $0xf8] sm:$0xff] %v309
    // Predicated region
    $region14: #{tpu_custom_call.1} parent=1 // pred_check
      _
    $region15: #{tpu_custom_call.1} parent=1 // pred_check_branch
      %344 = sbr.rel (0) target = $region17
    $region16: #{tpu_custom_call.1} parent=1 // pred_region
      %s346 = ssub.s32 4096, 4096
      %347 = vsyncadd [#allocation3], %s346
      %s348 = sshll.u32 [#allocation2], 4
      %s349 = int_to_ptr.vmem [resolvable:$true] %s348
      %354 = dma.vmem_to_hbm [thread:$0]  %s349, 4096, %s3, [#allocation3], 512, 512, 32
    $region17: #{tpu_custom_call.1} parent=1 // pred_fallthru
      _
    // Predicated region
    $region18: #{tpu_custom_call.1} parent=1 // pred_check
      _
    $region19: #{tpu_custom_call.1} parent=1 // pred_check_branch
      %356 = sbr.rel (0) target = $region21
    $region20: #{tpu_custom_call.1} parent=1 // pred_region
      %357 = dma.done [#allocation3], 4096
    $region21: #{tpu_custom_call.1} parent=1 // pred_fallthru
      _
    %358 = vsyncpa [#allocation3], 1

</llo_original>
